<compile_context>
chip_gen: v5e
topology: v5e:2x2
jax: 0.10.0
libtpu: 0.0.40
codegen_flags: <defaults>
</compile_context>

<pallas_src>
import jax
import jax.numpy as jnp
from jax import lax
from jax.experimental import pallas as pl
from jax.experimental.pallas import tpu as pltpu


def _round_up(n, m):
    return ((n + m - 1) // m) * m


def _cdiv(a, b):
    return (a + b - 1) // b


def _vmem_budget_bytes():
    """Per-generation scoped-VMEM budget for this kernel."""
    try:
        kind = jax.devices()[0].device_kind.lower()
    except Exception:
        kind = ""
    if "v7" in kind:
        # v7x: 64 MiB per TensorCore -- leave headroom for compiler scratch.
        return 48 * 1024 * 1024
    if "v5" in kind or "v6" in kind:
        # v5e / v6e: 128 MiB physical VMEM; raise well above the default limit.
        return 104 * 1024 * 1024
    # Unknown chip (or interpreter): stay conservative.
    return 64 * 1024 * 1024


def _softmax_linear_kernel(x_ref, w_ref, b_ref, o_ref):
    # x_ref: (TB, D)      batch-tiled, pipelined
    # w_ref: (D, C_pad)   resident VMEM (single-buffered), pre-transposed
    # b_ref: (1, C_pad)   resident VMEM, pad entries = -1e30
    # o_ref: (TB, C_pad)
    x = x_ref[...]
    w = w_ref[...]
    if w.dtype != x.dtype:           # bf16-weight path: feed the MXU its native dtype
        x = x.astype(w.dtype)
    # Canonical (M,K)x(K,N) contraction, f32 accumulation on the MXU.
    logits = jnp.dot(x, w, preferred_element_type=jnp.float32) + b_ref[...]
    m = jnp.max(logits, axis=-1, keepdims=True)
    e = jnp.exp(logits - m)
    denom = jnp.sum(e, axis=-1, keepdims=True)
    # Exact normalization: denom is only (TB, 1), so a full-precision
    # reciprocal is negligible and guarantees rows sum to 1 (the approx-only
    # reciprocal previously left ~1e-3 error on the row sums).
    inv = 1.0 / denom
    o_ref[...] = (e * inv).astype(o_ref.dtype)


def prepare_params(weight, bias, *, lane=128, matmul_dtype=None):
    """One-time, off-hot-path parameter preparation.

    weight: (num_classes, input_size) PyTorch layout
            -> transposed + lane-padded to (input_size, C_pad) so the kernel
               runs a standard x @ W contraction (no per-step transpose).
    bias:   (num_classes,) -> (1, C_pad); pad entries get -1e30 so padded
            classes carry ~0 softmax mass.
    matmul_dtype: optionally store the weight in bf16 (MXU-native dtype);
            accumulation stays f32 inside the kernel.
    """
    C, D = weight.shape
    C_pad = _round_up(C, lane)
    w_t = jnp.zeros((D, C_pad), weight.dtype).at[:, :C].set(weight.T)
    if matmul_dtype is not None:
        w_t = w_t.astype(matmul_dtype)
    b_pad = jnp.full((1, C_pad), -1e30, jnp.float32).at[0, :C].set(
        bias.astype(jnp.float32))
    return w_t, b_pad


def softmax_classifier_forward(x, w_t, b_pad, num_classes, *,
                               tb_max=1024, out_dtype=None):
    """softmax(x @ W^T + b, axis=1), W given in prepared (D, C_pad) layout."""
    B, D = x.shape
    Dw, C_pad = w_t.shape
    assert Dw == D, "weight was not prepared for this input size"
    out_dtype = jnp.dtype(x.dtype if out_dtype is None else out_dtype)

    # --- size the batch tile from the per-generation VMEM budget -----------
    budget = _vmem_budget_bytes()
    weight_bytes = int(w_t.size) * w_t.dtype.itemsize    # single-buffered (resident)
    bias_bytes = int(b_pad.size) * b_pad.dtype.itemsize
    # double-buffered x tile + double-buffered out tile, per batch row:
    per_row = 2 * D * x.dtype.itemsize + 2 * C_pad * out_dtype.itemsize
    avail = (budget * 3) // 4 - weight_bytes - bias_bytes
    # TODO(synk): add a class-tiled online-softmax path for weights too large
    # to stay resident in a single TensorCore's VMEM.
    avail = max(avail, 8 * per_row)
    tb_budget = max(8, (avail // per_row) // 8 * 8)

    if B <= 8:
        tb = B                                    # single full-batch block
    else:
        tb = min(tb_max, tb_budget)
        # keep >= 2 grid steps so ("parallel",) can shard over v7x's 2 TCs
        tb = min(tb, _round_up(_cdiv(B, 2), 8))
        tb = max(8, min(tb, _round_up(B, 8)))

    grid = (_cdiv(B, tb),)   # no jnp.pad of x: Pallas masks the tail block

    out = pl.pallas_call(
        _softmax_linear_kernel,
        out_shape=jax.ShapeDtypeStruct((B, C_pad), out_dtype),
        grid=grid,
        in_specs=[
            pl.BlockSpec((tb, D), lambda i: (i, 0)),            # batch-tiled x
            pl.BlockSpec(memory_space=pltpu.MemorySpace.VMEM),  # resident weight
            pl.BlockSpec(memory_space=pltpu.MemorySpace.VMEM),  # resident bias
        ],
        out_specs=pl.BlockSpec((tb, C_pad), lambda i: (i, 0)),
        compiler_params=pltpu.CompilerParams(
            dimension_semantics=("parallel",),
            vmem_limit_bytes=budget,
        ),
    )(x, w_t, b_pad)

    return out[:, :num_classes]


def init_params(key, input_size, num_classes):
    """nn.Linear default init: U(-1/sqrt(in), 1/sqrt(in)) for weight and bias."""
    kw, kb = jax.random.split(key)
    bound = 1.0 / jnp.sqrt(jnp.float32(input_size))
    weight = jax.random.uniform(kw, (num_classes, input_size),
                                dtype=jnp.float32, minval=-bound, maxval=bound)
    bias = jax.random.uniform(kb, (num_classes,),
                              dtype=jnp.float32, minval=-bound, maxval=bound)
    return weight, bias


if __name__ == "__main__":
    key = jax.random.PRNGKey(0)
    kx, kp = jax.random.split(key)

    batch, input_size, num_classes = 8, 32, 10
    x = jax.random.normal(kx, (batch, input_size), dtype=jnp.float32)
    weight, bias = init_params(kp, input_size, num_classes)

    # Reference with PyTorch semantics: F.softmax(x @ W^T + b, dim=1).
    logits_ref = jnp.dot(x, weight.T, precision=lax.Precision.HIGHEST) + bias
    ref = jax.nn.softmax(logits_ref, axis=1)

    # ---- f32 path (matches the PyTorch module's f32 forward) --------------
    w_t, b_pad = prepare_params(weight, bias)
    out = jax.block_until_ready(
        softmax_classifier_forward(x, w_t, b_pad, num_classes))
    assert out.shape == (batch, num_classes)
    assert bool(jnp.allclose(out, ref, atol=5e-3, rtol=5e-3))
    assert bool(jnp.allclose(jnp.sum(out, axis=1), 1.0, atol=1e-4))

    # ---- bf16-weight path (perf option: MXU-native dtype, f32 accum) ------
    w_bf, b_pad_bf = prepare_params(weight, bias, matmul_dtype=jnp.bfloat16)
    out_bf = jax.block_until_ready(
        softmax_classifier_forward(x, w_bf, b_pad_bf, num_classes))
    assert out_bf.shape == (batch, num_classes)
    assert bool(jnp.allclose(out_bf, ref, atol=3e-2, rtol=3e-2))
    assert bool(jnp.allclose(jnp.sum(out_bf, axis=1), 1.0, atol=1e-4))

    print("KERNEL_OK")
</pallas_src>

<mosaic_0001>
module attributes {stable_mosaic.version = 11 : i64} {
  func.func @_softmax_linear_kernel(%arg0: i32, %arg1: memref<8x32xf32, #tpu.memory_space<vmem>>, %arg2: memref<32x128xf32, #tpu.memory_space<vmem>>, %arg3: memref<1x128xf32, #tpu.memory_space<vmem>>, %arg4: memref<8x128xf32, #tpu.memory_space<vmem>>) attributes {dimension_semantics = [#tpu.dimension_semantics<parallel>], iteration_bounds = array<i64: 1>, scalar_prefetch = 0 : i64, scratch_operands = 0 : i64, tpu.core_type = #tpu.core_type<tc>, window_params = [{transform_indices = @transform_0, window_bounds = array<i64: 8, 32>}, {pipeline_mode = #tpu.pipeline_mode<synchronous>, transform_indices = @transform_1, window_bounds = array<i64: 32, 128>}, {pipeline_mode = #tpu.pipeline_mode<synchronous>, transform_indices = @transform_2, window_bounds = array<i64: 1, 128>}, {transform_indices = @transform_3, window_bounds = array<i64: 8, 128>}]} {
    %c0 = arith.constant 0 : index
    %c0_0 = arith.constant 0 : index
    %0 = vector.load %arg1[%c0, %c0_0] : memref<8x32xf32, #tpu.memory_space<vmem>>, vector<8x32xf32>
    %c0_1 = arith.constant 0 : index
    %c0_2 = arith.constant 0 : index
    %1 = vector.load %arg2[%c0_1, %c0_2] : memref<32x128xf32, #tpu.memory_space<vmem>>, vector<32x128xf32>
    %cst = arith.constant dense<0.000000e+00> : vector<8x128xf32>
    %2 = tpu.matmul %0, %1, %cst {dimension_numbers = #tpu.dot_dimension_numbers<[1], [0], [0], [1], [0, 0, 1, 1], [], []>} : vector<8x32xf32>, vector<32x128xf32>, vector<8x128xf32> -> vector<8x128xf32>
    %c0_3 = arith.constant 0 : index
    %c0_4 = arith.constant 0 : index
    %3 = vector.load %arg3[%c0_3, %c0_4] : memref<1x128xf32, #tpu.memory_space<vmem>>, vector<1x128xf32>
    %4 = vector.broadcast %3 : vector<1x128xf32> to vector<8x128xf32>
    %5 = arith.addf %2, %4 : vector<8x128xf32>
    %cst_5 = arith.constant dense<0xFF800000> : vector<8xf32>
    %6 = vector.multi_reduction <maximumf>, %5, %cst_5 [1] : vector<8x128xf32> to vector<8xf32>
    %7 = vector.shape_cast %6 : vector<8xf32> to vector<8x1xf32>
    %8 = vector.broadcast %7 : vector<8x1xf32> to vector<8x128xf32>
    %9 = arith.subf %5, %8 : vector<8x128xf32>
    %10 = math.exp %9 : vector<8x128xf32>
    %cst_6 = arith.constant dense<0.000000e+00> : vector<8xf32>
    %11 = vector.multi_reduction <add>, %10, %cst_6 [1] : vector<8x128xf32> to vector<8xf32>
    %12 = vector.shape_cast %11 : vector<8xf32> to vector<8x1xf32>
    %cst_7 = arith.constant 1.000000e+00 : f32
    %13 = vector.broadcast %cst_7 : f32 to vector<8x1xf32>
    %14 = arith.divf %13, %12 : vector<8x1xf32>
    %15 = vector.broadcast %14 : vector<8x1xf32> to vector<8x128xf32>
    %16 = arith.mulf %10, %15 : vector<8x128xf32>
    %c0_8 = arith.constant 0 : index
    %c0_9 = arith.constant 0 : index
    %17 = vector.load %arg4[%c0_8, %c0_9] : memref<8x128xf32, #tpu.memory_space<vmem>>, vector<8x128xf32>
    tpu.vector_store %arg4[%c0_8, %c0_9], %16 {strides = array<i32>} : memref<8x128xf32, #tpu.memory_space<vmem>>, vector<8x128xf32>,
    return
  }
  func.func @transform_0(%arg0: i32) -> (i32, i32) {
    %c0_i32 = arith.constant 0 : i32
    %c0_i32_0 = arith.constant 0 : i32
    return %arg0, %c0_i32 : i32, i32
  }
  func.func @transform_1(%arg0: i32) -> (i32, i32) {
    %c0_i32 = arith.constant 0 : i32
    %c0_i32_0 = arith.constant 0 : i32
    %c0_i32_1 = arith.constant 0 : i32
    return %c0_i32, %c0_i32_0 : i32, i32
  }
  func.func @transform_2(%arg0: i32) -> (i32, i32) {
    %c0_i32 = arith.constant 0 : i32
    %c0_i32_0 = arith.constant 0 : i32
    %c0_i32_1 = arith.constant 0 : i32
    return %c0_i32, %c0_i32_0 : i32, i32
  }
  func.func @transform_3(%arg0: i32) -> (i32, i32) {
    %c0_i32 = arith.constant 0 : i32
    %c0_i32_0 = arith.constant 0 : i32
    return %arg0, %c0_i32 : i32, i32
  }
}

</mosaic_0001>

<llo_original>
// kernel: tpu_custom_call.1
$region0: #{tpu_custom_call.1}
  #allocation0 [shape = 'u32[]', space=smem, size = 0x4, offset = 0x4, fixed_abs, tag = 'smem constant byte address 0x4 - core index']
  #allocation1 [shape = 'u32[72,128]{1,0:T(1,128)}', space=vmem, size = 0x9000, scoped, tag = 'internal scratch']
  %s0 = inlined_call_operand.hbm [shape: f32[8,32], index: 0, kind: input, shape index: {}]
  %s1 = inlined_call_operand.hbm [shape: f32[32,128], index: 1, kind: input, shape index: {}]
  %s2 = inlined_call_operand.vmem [shape: f32[1,128], index: 2, kind: input, shape index: {}]
  %s3 = inlined_call_operand.hbm [shape: f32[8,128], index: 3, kind: output, shape index: {}]
  %s4 = sld [smem:[#allocation0]]
  $region30: #{tpu_custom_call.1} parent=0
    _
  %s6 = ssub.s32 1, %s4
  %s7 = scalar_select 0, %s6, %s4
  $region1: #{tpu_custom_call.1} parent=0
    #allocation2 [shape = 'u8[4096]{0}', space=vmem, size = 0x1000, scoped, tag = 'input window, operand 0, single buffered']
    #allocation3 [shape = 's32[1]{0}', space=sflag, size = 0x4, scoped, tag = 'scoped memory for tpu_custom_call.1']
    #allocation4 [shape = 's32[1]{0}', space=sflag, size = 0x4, scoped, tag = 'scoped memory for tpu_custom_call.1']
    #allocation5 [shape = 'u8[16384]{0}', space=vmem, size = 0x4000, scoped, tag = 'input window, operand 1, single buffered']
    #allocation6 [shape = 's32[1]{0}', space=sflag, size = 0x4, scoped, tag = 'scoped memory for tpu_custom_call.1']
    #allocation7 [shape = 'u8[4096]{0}', space=vmem, size = 0x1000, scoped, tag = 'output window, operand 0, single buffered']
    %8 = vsyncpa [#allocation3], 0
    %9 = vsyncpa [#allocation6], 0
    %10 = vsyncpa [#allocation4], 0
    // Predicated region
    $region2: #{tpu_custom_call.1} parent=1 // pred_check
      _
    $region3: #{tpu_custom_call.1} parent=1 // pred_check_branch
      %12 = sbr.rel (0) target = $region5
    $region4: #{tpu_custom_call.1} parent=1 // pred_region
      %14 = vsyncadd [#allocation3], 0
      %s16 = sshll.u32 %s0, 4
      %s17 = int_to_ptr.hbm [resolvable:$true] %s16
      %s18 = sshll.u32 [#allocation2], 4
      %s19 = int_to_ptr.vmem [resolvable:$true] %s18
      %21 = dma.hbm_to_vmem [thread:$0]  %s17, 128, %s19, [#allocation3]
    $region5: #{tpu_custom_call.1} parent=1 // pred_fallthru
      _
    // Predicated region
    $region6: #{tpu_custom_call.1} parent=1 // pred_check
      _
    $region7: #{tpu_custom_call.1} parent=1 // pred_check_branch
      %23 = sbr.rel (0) target = $region9
    $region8: #{tpu_custom_call.1} parent=1 // pred_region
      %25 = vsyncadd [#allocation6], 0
      %s26 = sshll.u32 %s1, 4
      %s27 = int_to_ptr.hbm [resolvable:$true] %s26
      %s28 = sshll.u32 [#allocation5], 4
      %s29 = int_to_ptr.vmem [resolvable:$true] %s28
      %34 = dma.hbm_to_vmem [thread:$0]  %s27, 512, %s29, [#allocation6], 128, 128, 8
    $region9: #{tpu_custom_call.1} parent=1 // pred_fallthru
      _
    // Predicated region
    $region10: #{tpu_custom_call.1} parent=1 // pred_check
      _
    $region11: #{tpu_custom_call.1} parent=1 // pred_check_branch
      %36 = sbr.rel (0) target = $region13
    $region12: #{tpu_custom_call.1} parent=1 // pred_region
      _
    $region13: #{tpu_custom_call.1} parent=1 // pred_fallthru
      _
    // Predicated region
    $region14: #{tpu_custom_call.1} parent=1 // pred_check
      _
    $region15: #{tpu_custom_call.1} parent=1 // pred_check_branch
      %38 = sbr.rel (0) target = $region17
    $region16: #{tpu_custom_call.1} parent=1 // pred_region
      %40 = dma.done [#allocation3], 128
    $region17: #{tpu_custom_call.1} parent=1 // pred_fallthru
      _
    // Predicated region
    $region18: #{tpu_custom_call.1} parent=1 // pred_check
      _
    $region19: #{tpu_custom_call.1} parent=1 // pred_check_branch
      %42 = sbr.rel (0) target = $region21
    $region20: #{tpu_custom_call.1} parent=1 // pred_region
      %44 = dma.done [#allocation6], 512
    $region21: #{tpu_custom_call.1} parent=1 // pred_fallthru
      _
    %v45 = vld [vmem:[#allocation2] sm:$0xff]
    %v46 = vld [vmem:[#allocation5] sm:$0xff]
    %v47 = vld [vmem:[#allocation5 + $0x8] sm:$0xff]
    %v48 = vld [vmem:[#allocation5 + $0x10] sm:$0xff]
    %v49 = vld [vmem:[#allocation5 + $0x18] sm:$0xff]
    %v50 = vld [vmem:[%s2] sm:$0x1]
    %v52 = vperm.slane %v50, 0
    %vm54 = vcmask 261120
    %v56 = vsel %vm54, %v45, 0
    %58 = vmatpush.msra.mxu0 0.0
    %59 = vmatpush.msra.mxu0 0.0
    %60 = vmatpush.msra.mxu0 0.0
    %61 = vmatpush.msra.mxu0 0.0
    %62 = vmatpush.msra.mxu0 0.0
    %63 = vmatpush.msra.mxu0 0.0
    %64 = vmatpush.msra.mxu0 0.0
    %65 = vmatpush.msra.mxu0 0.0
    %66 = vmatpush.msra.mxu0 0.0
    %67 = vmatpush.msra.mxu0 0.0
    %68 = vmatpush.msra.mxu0 0.0
    %69 = vmatpush.msra.mxu0 0.0
    %70 = vmatpush.msra.mxu0 %v49
    %71 = vmatpush.msra.mxu0 %v48
    %72 = vmatpush.msra.mxu0 %v47
    %73 = vmatpush.msra.mxu0 %v46
    %74 = vmatmul.f32.gmra.mxu0 %v56
    %v75 = vpop.f32.mrf.mxu0
    %v76 = vadd.f32 %v52, %v75
    %77 = vdwg.mxu0
    %78 = vmax.xlane.f32.xlu0 %v76
    %v79 = vpop.xlane.xlu0 %78
    %v80 = vsub.f32 %v76, %v79
    %v81 = vmul.f32 %v80, 1.442695
    %v82 = vpow.pop %v81
    %83 = vadd.xlane.f32.xlu0 %v82
    %v84 = vpop.xlane.xlu0 %83
    %v85 = vrcp.pop %v84
    %v86 = vmul.f32 %v84, %v85
    %v87 = vsub.f32 1.0, %v86
    %v88 = vmul.f32 %v85, %v87
    %v89 = vadd.f32 %v85, %v88
    %vm90 = vweird.f32 %v84
    %vm91 = vweird.f32 %v85
    %vm92 = vmor %vm90, %vm91
    %v93 = vsel %vm92, %v85, %v89
    %v94 = vand.u32 2147483647, %v84
    %vm95 = vcmp.eq.f32.partialorder %v94, 8.507059e+37
    %v96 = vand.u32 %v84, 2147483648
    %v97 = vor.u32 1.1754944e-38, %v96
    %v98 = vsel %vm95, %v97, %v93
    %v99 = vmul.f32 1.0, %v98
    %v100 = vmul.f32 %v82, %v99
    %101 = vst [vmem:[#allocation7] sm:$0xff] %v100
    // Predicated region
    $region22: #{tpu_custom_call.1} parent=1 // pred_check
      _
    $region23: #{tpu_custom_call.1} parent=1 // pred_check_branch
      %103 = sbr.rel (0) target = $region25
    $region24: #{tpu_custom_call.1} parent=1 // pred_region
      %105 = vsyncadd [#allocation4], 0
      %s107 = sshll.u32 [#allocation7], 4
      %s108 = int_to_ptr.vmem [resolvable:$true] %s107
      %s109 = sshll.u32 %s3, 4
      %s110 = int_to_ptr.hbm [resolvable:$true] %s109
      %112 = dma.vmem_to_hbm [thread:$0]  %s108, 128, %s110, [#allocation4]
    $region25: #{tpu_custom_call.1} parent=1 // pred_fallthru
      _
    // Predicated region
    $region26: #{tpu_custom_call.1} parent=1 // pred_check
      _
    $region27: #{tpu_custom_call.1} parent=1 // pred_check_branch
      %114 = sbr.rel (0) target = $region29
    $region28: #{tpu_custom_call.1} parent=1 // pred_region
      %116 = dma.done [#allocation4], 128
    $region29: #{tpu_custom_call.1} parent=1 // pred_fallthru
      _
    %117 = vsyncpa [#allocation3], 1
    %118 = vsyncpa [#allocation6], 1
    %119 = vsyncpa [#allocation4], 1

</llo_original>
